<compile_context>
chip_gen: v5e
topology: v5e:2x2
jax: 0.10.0
libtpu: 0.0.40
codegen_flags: <defaults>
</compile_context>

<pallas_src>
import functools

import jax
import jax.numpy as jnp
from jax import lax
from jax.experimental import pallas as pl
from jax.experimental.pallas import tpu as pltpu

# ----------------------------- config (small) ------------------------------
IMAGE_SIZE = 64
PATCH_SIZE = 16
NUM_CHANNELS = 3
HIDDEN_SIZE = 48
BATCH = 4

NUM_PATCHES = (IMAGE_SIZE // PATCH_SIZE) ** 2          # 16
SEQ = NUM_PATCHES + 1                                  # 17 (cls + patches)
CPP = NUM_CHANNELS * PATCH_SIZE * PATCH_SIZE           # 768
HPAD = 128                                             # lane-dense padded hidden width

CORE_SPLIT = 2 if BATCH % 2 == 0 else 1                # 2-way parallel axis (v7x TCs)
IMGS_PER_STEP = BATCH // CORE_SPLIT                    # images folded per grid step
ROWS = IMGS_PER_STEP * SEQ


# ------------------------------- kernel ------------------------------------
def _embeddings_kernel(patches_ref, w_ref, b_ref, add_ref, o_ref, *, imgs, seq):
    # patches_ref: (1, imgs*seq, CPP)   row 0 of each image's block is a zero CLS row
    # w_ref      : (CPP, HPAD)          patch-projection weight, zero-padded cols
    # b_ref      : (1, HPAD)            projection bias, zero-padded
    # add_ref    : (imgs*seq, HPAD)     per-row additive table:
    #                                   cls rows -> cls_token + pos[0]
    #                                   patch rows -> pos[1..]
    # o_ref      : (1, imgs*seq, HPAD)
    p = patches_ref[0]                                          # (rows, CPP)

    # whole folded batch in ONE matmul (the CLS rows are zero -> projection = bias,
    # which is discarded by the mask below)
    emb = jnp.dot(p, w_ref[...], preferred_element_type=jnp.float32) + b_ref[...]

    add = add_ref[...]                                          # (rows, HPAD)

    # cls-row mask: rows 0, seq, 2*seq, ...  (static small loop -> cheap VPU compares)
    row_id = lax.broadcasted_iota(jnp.int32, (imgs * seq, 1), 0)
    is_cls = row_id == 0
    for i in range(1, imgs):
        is_cls = jnp.logical_or(is_cls, row_id == i * seq)

    # cls rows take (cls_token + pos[0]) verbatim; patch rows take projection + pos
    o_ref[0] = jnp.where(is_cls, add, emb + add)


# ------------------------------- glue (JAX) ---------------------------------
def patchify(x, patch):
    # stride==kernel Conv2d == patch extraction (data movement) + matmul
    B, C, H, W = x.shape
    gh, gw = H // patch, W // patch
    x = x.reshape(B, C, gh, patch, gw, patch)
    x = x.transpose(0, 2, 4, 1, 3, 5)                   # (B, gh, gw, C, P, P)
    return x.reshape(B, gh * gw, C * patch * patch)


def init_params(key):
    k1, k2, k3, k4 = jax.random.split(key, 4)
    conv_w = 0.02 * jax.random.normal(
        k1, (HIDDEN_SIZE, NUM_CHANNELS, PATCH_SIZE, PATCH_SIZE), jnp.float32)
    conv_b = 0.02 * jax.random.normal(k2, (HIDDEN_SIZE,), jnp.float32)
    cls_token = jax.random.normal(k3, (1, 1, HIDDEN_SIZE), jnp.float32)
    pos_emb = jax.random.normal(k4, (1, SEQ, HIDDEN_SIZE), jnp.float32)
    return {"conv_w": conv_w, "conv_b": conv_b,
            "cls_token": cls_token, "pos_emb": pos_emb}


def embeddings_forward(x, params):
    B = x.shape[0]
    assert B == BATCH

    patches = patchify(x, PATCH_SIZE)                            # (B, NP, CPP)
    # prepend a zero "patch" row per image for the CLS position (its projection is
    # discarded by the in-kernel mask), then fold batch onto the grid axis
    patches_ext = jnp.concatenate(
        [jnp.zeros((B, 1, CPP), jnp.float32), patches], axis=1)  # (B, SEQ, CPP)
    patches_fold = patches_ext.reshape(CORE_SPLIT, ROWS, CPP)

    # weights / bias, zero-padded to a lane-dense 128-wide hidden slab
    w = params["conv_w"].reshape(HIDDEN_SIZE, CPP).T             # (CPP, H)
    w_pad = jnp.zeros((CPP, HPAD), jnp.float32).at[:, :HIDDEN_SIZE].set(w)
    b_pad = jnp.zeros((1, HPAD), jnp.float32).at[:, :HIDDEN_SIZE].set(
        params["conv_b"][None, :])

    # additive table: row 0 = cls_token + pos[0], rows 1.. = pos[1..]; tiled per image
    add = params["pos_emb"][0].at[0].add(params["cls_token"][0, 0])     # (SEQ, H)
    add_pad = jnp.zeros((SEQ, HPAD), jnp.float32).at[:, :HIDDEN_SIZE].set(add)
    add_tiled = jnp.tile(add_pad, (IMGS_PER_STEP, 1))                   # (ROWS, HPAD)

    kernel = functools.partial(_embeddings_kernel, imgs=IMGS_PER_STEP, seq=SEQ)

    out = pl.pallas_call(
        kernel,
        grid=(CORE_SPLIT,),
        in_specs=[
            pl.BlockSpec((1, ROWS, CPP), lambda g: (g, 0, 0)),   # per-step image slab
            pl.BlockSpec((CPP, HPAD), lambda g: (0, 0)),         # resident weight
            pl.BlockSpec((1, HPAD), lambda g: (0, 0)),           # resident bias
            pl.BlockSpec((ROWS, HPAD), lambda g: (0, 0)),        # resident cls+pos table
        ],
        out_specs=pl.BlockSpec((1, ROWS, HPAD), lambda g: (g, 0, 0)),
        out_shape=jax.ShapeDtypeStruct((CORE_SPLIT, ROWS, HPAD), jnp.float32),
        compiler_params=pltpu.CompilerParams(dimension_semantics=("parallel",)),
    )(patches_fold, w_pad, b_pad, add_tiled)

    # Dropout(p=0.0) is identity. Un-fold batch and drop the lane padding.
    return out.reshape(B, SEQ, HPAD)[:, :, :HIDDEN_SIZE]


def embeddings_reference(x, params):
    # pure-JAX reference of the torch Embeddings forward
    patches = patchify(x, PATCH_SIZE)
    w = params["conv_w"].reshape(HIDDEN_SIZE, CPP).T
    proj = jnp.einsum("bpc,ch->bph", patches, w,
                      precision=lax.Precision.HIGHEST) + params["conv_b"]
    cls = jnp.broadcast_to(params["cls_token"], (x.shape[0], 1, HIDDEN_SIZE))
    emb = jnp.concatenate([cls, proj], axis=1) + params["pos_emb"]
    return emb


if __name__ == "__main__":
    key = jax.random.PRNGKey(0)
    pkey, xkey = jax.random.split(key)
    params = init_params(pkey)
    x = jax.random.normal(
        xkey, (BATCH, NUM_CHANNELS, IMAGE_SIZE, IMAGE_SIZE), jnp.float32)

    out = embeddings_forward(x, params)
    out = jax.block_until_ready(out)
    assert out.shape == (BATCH, SEQ, HIDDEN_SIZE), out.shape
    assert jnp.all(jnp.isfinite(out))

    ref = embeddings_reference(x, params)
    assert jnp.allclose(out, ref, atol=1e-3, rtol=1e-3), float(
        jnp.max(jnp.abs(out - ref)))
    print("KERNEL_OK")
</pallas_src>

<mosaic_0001>
module attributes {stable_mosaic.version = 11 : i64} {
  func.func @_embeddings_kernel(%arg0: i32, %arg1: memref<1x34x768xf32, #tpu.memory_space<vmem>>, %arg2: memref<768x128xf32, #tpu.memory_space<vmem>>, %arg3: memref<1x128xf32, #tpu.memory_space<vmem>>, %arg4: memref<34x128xf32, #tpu.memory_space<vmem>>, %arg5: memref<1x34x128xf32, #tpu.memory_space<vmem>>) attributes {dimension_semantics = [#tpu.dimension_semantics<parallel>], iteration_bounds = array<i64: 2>, scalar_prefetch = 0 : i64, scratch_operands = 0 : i64, tpu.core_type = #tpu.core_type<tc>, window_params = [{transform_indices = @transform_0, window_bounds = array<i64: 1, 34, 768>}, {pipeline_mode = #tpu.pipeline_mode<synchronous>, transform_indices = @transform_1, window_bounds = array<i64: 768, 128>}, {pipeline_mode = #tpu.pipeline_mode<synchronous>, transform_indices = @transform_2, window_bounds = array<i64: 1, 128>}, {pipeline_mode = #tpu.pipeline_mode<synchronous>, transform_indices = @transform_3, window_bounds = array<i64: 34, 128>}, {transform_indices = @transform_4, window_bounds = array<i64: 1, 34, 128>}]} {
    %c0 = arith.constant 0 : index
    %c0_0 = arith.constant 0 : index
    %c0_1 = arith.constant 0 : index
    %0 = vector.load %arg1[%c0, %c0_0, %c0_1] : memref<1x34x768xf32, #tpu.memory_space<vmem>>, vector<1x34x768xf32>
    %1 = vector.shape_cast %0 : vector<1x34x768xf32> to vector<34x768xf32>
    %c0_2 = arith.constant 0 : index
    %c0_3 = arith.constant 0 : index
    %2 = vector.load %arg2[%c0_2, %c0_3] : memref<768x128xf32, #tpu.memory_space<vmem>>, vector<768x128xf32>
    %cst = arith.constant dense<0.000000e+00> : vector<34x128xf32>
    %3 = tpu.matmul %1, %2, %cst {dimension_numbers = #tpu.dot_dimension_numbers<[1], [0], [0], [1], [0, 0, 1, 1], [], []>} : vector<34x768xf32>, vector<768x128xf32>, vector<34x128xf32> -> vector<34x128xf32>
    %c0_4 = arith.constant 0 : index
    %c0_5 = arith.constant 0 : index
    %4 = vector.load %arg3[%c0_4, %c0_5] : memref<1x128xf32, #tpu.memory_space<vmem>>, vector<1x128xf32>
    %5 = vector.broadcast %4 : vector<1x128xf32> to vector<34x128xf32>
    %6 = arith.addf %3, %5 : vector<34x128xf32>
    %c0_6 = arith.constant 0 : index
    %c0_7 = arith.constant 0 : index
    %7 = vector.load %arg4[%c0_6, %c0_7] : memref<34x128xf32, #tpu.memory_space<vmem>>, vector<34x128xf32>
    %8 = tpu.iota {dimensions = array<i32: 0>} : vector<34x1xi32>
    %c0_i32 = arith.constant 0 : i32
    %9 = vector.broadcast %c0_i32 : i32 to vector<34x1xi32>
    %10 = arith.cmpi eq, %8, %9 : vector<34x1xi32>
    %c17_i32 = arith.constant 17 : i32
    %11 = vector.broadcast %c17_i32 : i32 to vector<34x1xi32>
    %12 = arith.cmpi eq, %8, %11 : vector<34x1xi32>
    %13 = arith.ori %10, %12 : vector<34x1xi1>
    %14 = arith.addf %6, %7 : vector<34x128xf32>
    %15 = vector.shape_cast %13 : vector<34x1xi1> to vector<34x1xi1>
    %16 = vector.broadcast %15 : vector<34x1xi1> to vector<34x128xi1>
    %17 = arith.select %16, %7, %14 : vector<34x128xi1>, vector<34x128xf32>
    %c0_8 = arith.constant 0 : index
    %c0_9 = arith.constant 0 : index
    %c0_10 = arith.constant 0 : index
    %18 = vector.load %arg5[%c0_8, %c0_9, %c0_10] : memref<1x34x128xf32, #tpu.memory_space<vmem>>, vector<1x34x128xf32>
    %19 = vector.shape_cast %18 : vector<1x34x128xf32> to vector<34x128xf32>
    %20 = vector.shape_cast %17 : vector<34x128xf32> to vector<1x34x128xf32>
    tpu.vector_store %arg5[%c0_8, %c0_9, %c0_10], %20 {strides = array<i32>} : memref<1x34x128xf32, #tpu.memory_space<vmem>>, vector<1x34x128xf32>,
    return
  }
  func.func @transform_0(%arg0: i32) -> (i32, i32, i32) {
    %c0_i32 = arith.constant 0 : i32
    %c0_i32_0 = arith.constant 0 : i32
    %c0_i32_1 = arith.constant 0 : i32
    return %arg0, %c0_i32, %c0_i32_0 : i32, i32, i32
  }
  func.func @transform_1(%arg0: i32) -> (i32, i32) {
    %c0_i32 = arith.constant 0 : i32
    %c0_i32_0 = arith.constant 0 : i32
    %c0_i32_1 = arith.constant 0 : i32
    return %c0_i32, %c0_i32_0 : i32, i32
  }
  func.func @transform_2(%arg0: i32) -> (i32, i32) {
    %c0_i32 = arith.constant 0 : i32
    %c0_i32_0 = arith.constant 0 : i32
    %c0_i32_1 = arith.constant 0 : i32
    return %c0_i32, %c0_i32_0 : i32, i32
  }
  func.func @transform_3(%arg0: i32) -> (i32, i32) {
    %c0_i32 = arith.constant 0 : i32
    %c0_i32_0 = arith.constant 0 : i32
    %c0_i32_1 = arith.constant 0 : i32
    return %c0_i32, %c0_i32_0 : i32, i32
  }
  func.func @transform_4(%arg0: i32) -> (i32, i32, i32) {
    %c0_i32 = arith.constant 0 : i32
    %c0_i32_0 = arith.constant 0 : i32
    %c0_i32_1 = arith.constant 0 : i32
    return %arg0, %c0_i32, %c0_i32_0 : i32, i32, i32
  }
}

</mosaic_0001>

<llo_original>
// kernel: tpu_custom_call.1
$region0: #{tpu_custom_call.1}
  #allocation0 [shape = 'u32[]', space=smem, size = 0x4, offset = 0x4, fixed_abs, tag = 'smem constant byte address 0x4 - core index']
  #allocation1 [shape = 'u32[72,128]{1,0:T(1,128)}', space=vmem, size = 0x9000, scoped, tag = 'internal scratch']
  %s0 = inlined_call_operand.vmem [shape: f32[2,34,768], index: 0, kind: input, shape index: {}]
  %s1 = inlined_call_operand.vmem [shape: f32[768,128], index: 1, kind: input, shape index: {}]
  %s2 = inlined_call_operand.vmem [shape: f32[1,128], index: 2, kind: input, shape index: {}]
  %s3 = inlined_call_operand.vmem [shape: f32[34,128], index: 3, kind: input, shape index: {}]
  %s4 = inlined_call_operand.vmem [shape: f32[2,34,128], index: 4, kind: output, shape index: {}]
  %s5 = sld [smem:[#allocation0]]
  $region49: #{tpu_custom_call.1} parent=0
    _
  %s7 = ssub.s32 1, %s5
  %s8 = scalar_select 0, %s7, %s5
  loop: start=0, step=1, limit=4
  $region2: #{tpu_custom_call.1} parent=0 // loop_pre_header
    _
  $region3: #{tpu_custom_call.1} parent=0 // loop_header
    %s10 = sphi 0, %s14
    %p11 = scmp.ge.s32.totalorder %s10, 4
    %s20 = sphi 0, %s22
    %s23 = sphi 0, %s20
    %s24 = sphi 0, %s23
    %s40 = sphi 0, %s24
    %s44 = sphi 0, %s44
    %s46 = sphi 0, %s44
    %s47 = sphi 0, %s46
    %s61 = sphi 0, %s47
    %s65 = sphi 0, %s65
    %s67 = sphi 0, %s65
    %s68 = sphi 0, %s67
    %s82 = sphi 0, %s68
    %s86 = sphi 0, %s86
    %s88 = sphi 0, %s86
    %s89 = sphi 0, %s88
    %s103 = sphi 0, %s89
    %s109 = sphi 0, %s111
    %s112 = sphi 0, %s109
    %s113 = sphi 0, %s112
    %s129 = sphi 0, %s113
  $region4: #{tpu_custom_call.1} parent=0 // loop_header_branch
    %13 = sbr.rel (%p11) target = $region8
  $region5: #{tpu_custom_call.1} parent=0 // loop_body
    %s15 = ssub.s32 %s10, 1
    %s16 = ssub.s32 %s10, 2
    %s17 = sadd.s32 %s10, 1
    %s18 = ssub.s32 %s10, %s17
    %p19 = scmp.eq.s32.totalorder %s18, 0
    %s21 = sadd.s32 %s20, 1
    %s22 = scalar_select %p19, %s20, %s21
    %p25 = pneg %p19
    %p26 = scmp.eq.s32.totalorder %s10, 1
    %p27 = por %p25, %p26
    %p28 = scmp.ne.s32.totalorder %s20, %s23
    %p29 = scmp.eq.s32.totalorder %s10, 0
    %p30 = por %p28, %p29
    %p31 = scmp.ne.s32.totalorder %s20, %s23
    %p32 = scmp.eq.s32.totalorder %s15, 1
    %p33 = por %p31, %p32
    %p34 = scmp.ne.s32.totalorder %s23, %s24
    %p35 = scmp.eq.s32.totalorder %s15, 0
    %p36 = por %p34, %p35
    %p37 = scmp.ne.s32.totalorder %s23, %s24
    %p38 = scmp.eq.s32.totalorder %s16, 1
    %p39 = por %p37, %p38
    %p41 = scmp.ne.s32.totalorder %s24, %s40
    %p42 = scmp.eq.s32.totalorder %s16, 0
    %p43 = por %p41, %p42
    %s45 = sadd.s32 %s44, 1
    %p48 = scmp.eq.s32.totalorder %s10, 1
    %p49 = scmp.ne.s32.totalorder %s44, %s46
    %p50 = scmp.eq.s32.totalorder %s10, 0
    %p51 = por %p49, %p50
    %p52 = scmp.ne.s32.totalorder %s44, %s46
    %p53 = scmp.eq.s32.totalorder %s15, 1
    %p54 = por %p52, %p53
    %p55 = scmp.ne.s32.totalorder %s46, %s47
    %p56 = scmp.eq.s32.totalorder %s15, 0
    %p57 = por %p55, %p56
    %p58 = scmp.ne.s32.totalorder %s46, %s47
    %p59 = scmp.eq.s32.totalorder %s16, 1
    %p60 = por %p58, %p59
    %p62 = scmp.ne.s32.totalorder %s47, %s61
    %p63 = scmp.eq.s32.totalorder %s16, 0
    %p64 = por %p62, %p63
    %s66 = sadd.s32 %s65, 1
    %p69 = scmp.eq.s32.totalorder %s10, 1
    %p70 = scmp.ne.s32.totalorder %s65, %s67
    %p71 = scmp.eq.s32.totalorder %s10, 0
    %p72 = por %p70, %p71
    %p73 = scmp.ne.s32.totalorder %s65, %s67
    %p74 = scmp.eq.s32.totalorder %s15, 1
    %p75 = por %p73, %p74
    %p76 = scmp.ne.s32.totalorder %s67, %s68
    %p77 = scmp.eq.s32.totalorder %s15, 0
    %p78 = por %p76, %p77
    %p79 = scmp.ne.s32.totalorder %s67, %s68
    %p80 = scmp.eq.s32.totalorder %s16, 1
    %p81 = por %p79, %p80
    %p83 = scmp.ne.s32.totalorder %s68, %s82
    %p84 = scmp.eq.s32.totalorder %s16, 0
    %p85 = por %p83, %p84
    %s87 = sadd.s32 %s86, 1
    %p90 = scmp.eq.s32.totalorder %s10, 1
    %p91 = scmp.ne.s32.totalorder %s86, %s88
    %p92 = scmp.eq.s32.totalorder %s10, 0
    %p93 = por %p91, %p92
    %p94 = scmp.ne.s32.totalorder %s86, %s88
    %p95 = scmp.eq.s32.totalorder %s15, 1
    %p96 = por %p94, %p95
    %p97 = scmp.ne.s32.totalorder %s88, %s89
    %p98 = scmp.eq.s32.totalorder %s15, 0
    %p99 = por %p97, %p98
    %p100 = scmp.ne.s32.totalorder %s88, %s89
    %p101 = scmp.eq.s32.totalorder %s16, 1
    %p102 = por %p100, %p101
    %p104 = scmp.ne.s32.totalorder %s89, %s103
    %p105 = scmp.eq.s32.totalorder %s16, 0
    %p106 = por %p104, %p105
    %s107 = ssub.s32 %s10, %s17
    %p108 = scmp.eq.s32.totalorder %s107, 0
    %s110 = sadd.s32 %s109, 1
    %s111 = scalar_select %p108, %s109, %s110
    %p114 = pneg %p108
    %p115 = scmp.eq.s32.totalorder %s10, 1
    %p116 = por %p114, %p115
    %p117 = scmp.ne.s32.totalorder %s109, %s112
    %p118 = scmp.eq.s32.totalorder %s10, 0
    %p119 = por %p117, %p118
    %p120 = scmp.ne.s32.totalorder %s109, %s112
    %p121 = scmp.eq.s32.totalorder %s15, 1
    %p122 = por %p120, %p121
    %p123 = scmp.ne.s32.totalorder %s112, %s113
    %p124 = scmp.eq.s32.totalorder %s15, 0
    %p125 = por %p123, %p124
    %p126 = scmp.ne.s32.totalorder %s112, %s113
    %p127 = scmp.eq.s32.totalorder %s16, 1
    %p128 = por %p126, %p127
    %p130 = scmp.ne.s32.totalorder %s113, %s129
    %p131 = scmp.eq.s32.totalorder %s16, 0
    %p132 = por %p130, %p131
    %p133 = scmp.le.s32.totalorder 1, %s10
    %p134 = scmp.lt.s32.totalorder %s10, 3
    %p135 = pnand %p133, %p134
    %p136 = pneg %p135
    // Predicated region
    $region9: #{tpu_custom_call.1} parent=5 // pred_check
      _
    $region10: #{tpu_custom_call.1} parent=5 // pred_check_branch
      %138 = sbr.rel (%p135) target = $region12
    $region11: #{tpu_custom_call.1} parent=5 // pred_region
      %s139 = ssub.s32 %s10, 1
      // Predicated region
      $region13: #{tpu_custom_call.1} parent=11 // pred_check
        %p140 = pneg %p57
      $region14: #{tpu_custom_call.1} parent=11 // pred_check_branch
        %142 = sbr.rel (%p140) target = $region16
      $region15: #{tpu_custom_call.1} parent=11 // pred_region
        _
      $region16: #{tpu_custom_call.1} parent=11 // pred_fallthru
        _
      // Predicated region
      $region17: #{tpu_custom_call.1} parent=11 // pred_check
        %p143 = pneg %p78
      $region18: #{tpu_custom_call.1} parent=11 // pred_check_branch
        %145 = sbr.rel (%p143) target = $region20
      $region19: #{tpu_custom_call.1} parent=11 // pred_region
        _
      $region20: #{tpu_custom_call.1} parent=11 // pred_fallthru
        _
      // Predicated region
      $region21: #{tpu_custom_call.1} parent=11 // pred_check
        %p146 = pneg %p99
      $region22: #{tpu_custom_call.1} parent=11 // pred_check_branch
        %148 = sbr.rel (%p146) target = $region24
      $region23: #{tpu_custom_call.1} parent=11 // pred_region
        _
      $region24: #{tpu_custom_call.1} parent=11 // pred_fallthru
        _
    $region12: #{tpu_custom_call.1} parent=5 // pred_fallthru
      _
    %p149 = scmp.lt.s32.totalorder %s10, 2
    // Predicated region
    $region25: #{tpu_custom_call.1} parent=5 // pred_check
      %p150 = pneg %p149
    $region26: #{tpu_custom_call.1} parent=5 // pred_check_branch
      %152 = sbr.rel (%p150) target = $region28
    $region27: #{tpu_custom_call.1} parent=5 // pred_region
      // Predicated region
      $region29: #{tpu_custom_call.1} parent=27 // pred_check
        %p153 = pneg %p30
      $region30: #{tpu_custom_call.1} parent=27 // pred_check_branch
        %155 = sbr.rel (%p153) target = $region32
      $region31: #{tpu_custom_call.1} parent=27 // pred_region
        %p156 = scmp.lt.s32.totalorder %s10, 1
        %s157 = scalar_select %p156, %s10, 1
        %s158 = smul.addr %s157, 30
        %s159 = smul.addr %s158, 8
        %s160 = scalar_lea.vmem %s0, %s159
      $region32: #{tpu_custom_call.1} parent=27 // pred_fallthru
        _
    $region28: #{tpu_custom_call.1} parent=5 // pred_fallthru
      _
    %p161 = scmp.le.s32.totalorder 1, %s10
    %p162 = scmp.lt.s32.totalorder %s10, 3
    %p163 = pnand %p161, %p162
    %p164 = pneg %p163
    // Predicated region
    $region33: #{tpu_custom_call.1} parent=5 // pred_check
      _
    $region34: #{tpu_custom_call.1} parent=5 // pred_check_branch
      %166 = sbr.rel (%p163) target = $region36
    $region35: #{tpu_custom_call.1} parent=5 // pred_region
      %s167 = ssub.s32 %s10, 1
      %p168 = scmp.lt.s32.totalorder %s15, 1
      %s169 = scalar_select %p168, %s15, 1
      %s170 = smul.addr %s169, 30
      %s171 = smul.addr %s170, 8
      %s172 = scalar_lea.vmem %s0, %s171
      %p173 = pneg %p36
      %p174 = pneg %p33
      %p175 = pneg %p57
      %p176 = pneg %p54
      %p177 = pneg %p78
      %p178 = pneg %p75
      %p179 = pneg %p99
      %p180 = pneg %p96
      %p181 = pneg %p125
      %p182 = pneg %p122
      %p183 = scmp.lt.s32.totalorder %s15, 1
      %s184 = scalar_select %p183, %s15, 1
      %s185 = smul.addr %s184, 5
      %s186 = smul.addr %s185, 8
      %s187 = scalar_lea.vmem %s4, %s186
      %p188 = scmp.lt.s32.totalorder %s15, 1
      %s189 = scalar_select %p188, %s15, 1
      %s190 = smul.addr %s189, 30
      %s191 = smul.addr %s190, 8
      %s192 = scalar_lea.vmem %s0, %s191
      %p193 = scmp.lt.s32.totalorder %s15, 1
      %s194 = scalar_select %p193, %s15, 1
      %s195 = smul.addr %s194, 5
      %s196 = smul.addr %s195, 8
      %s197 = scalar_lea.vmem %s4, %s196
      %v198 = vld [vmem:[%s192] sm:$0xff]
      %v199 = vld [vmem:[%s192 + $0x8] sm:$0xff]
      %v200 = vld [vmem:[%s192 + $0x10] sm:$0xff]
      %v201 = vld [vmem:[%s192 + $0x18] sm:$0xff]
      %v202 = vld [vmem:[%s192 + $0x20] sm:$0xff]
      %v203 = vld [vmem:[%s192 + $0x28] sm:$0xff]
      %v204 = vld [vmem:[%s192 + $0x30] sm:$0xff]
      %v205 = vld [vmem:[%s192 + $0x38] sm:$0xff]
      %v206 = vld [vmem:[%s192 + $0x40] sm:$0xff]
      %v207 = vld [vmem:[%s192 + $0x48] sm:$0xff]
      %v208 = vld [vmem:[%s192 + $0x50] sm:$0xff]
      %v209 = vld [vmem:[%s192 + $0x58] sm:$0xff]
      %v210 = vld [vmem:[%s192 + $0x60] sm:$0xff]
      %v211 = vld [vmem:[%s192 + $0x68] sm:$0xff]
      %v212 = vld [vmem:[%s192 + $0x70] sm:$0xff]
      %v213 = vld [vmem:[%s192 + $0x78] sm:$0xff]
      %v214 = vld [vmem:[%s192 + $0x80] sm:$0xff]
      %v215 = vld [vmem:[%s192 + $0x88] sm:$0xff]
      %v216 = vld [vmem:[%s192 + $0x90] sm:$0xff]
      %v217 = vld [vmem:[%s192 + $0x98] sm:$0xff]
      %v218 = vld [vmem:[%s192 + $0xa0] sm:$0xff]
      %v219 = vld [vmem:[%s192 + $0xa8] sm:$0xff]
      %v220 = vld [vmem:[%s192 + $0xb0] sm:$0xff]
      %v221 = vld [vmem:[%s192 + $0xb8] sm:$0xff]
      %v222 = vld [vmem:[%s192 + $0xc0] sm:$0x3]
      %v223 = vld [vmem:[%s192 + $0xc8] sm:$0x3]
      %v224 = vld [vmem:[%s192 + $0xd0] sm:$0x3]
      %v225 = vld [vmem:[%s192 + $0xd8] sm:$0x3]
      %v226 = vld [vmem:[%s192 + $0xe0] sm:$0x3]
      %v227 = vld [vmem:[%s192 + $0xe8] sm:$0x3]
      %v228 = vld [vmem:[%s1] sm:$0xff]
      %v229 = vld [vmem:[%s1 + $0x8] sm:$0xff]
      %v230 = vld [vmem:[%s1 + $0x10] sm:$0xff]
      %v231 = vld [vmem:[%s1 + $0x18] sm:$0xff]
      %v232 = vld [vmem:[%s1 + $0x20] sm:$0xff]
      %v233 = vld [vmem:[%s1 + $0x28] sm:$0xff]
      %v234 = vld [vmem:[%s1 + $0x30] sm:$0xff]
      %v235 = vld [vmem:[%s1 + $0x38] sm:$0xff]
      %v236 = vld [vmem:[%s1 + $0x40] sm:$0xff]
      %v237 = vld [vmem:[%s1 + $0x48] sm:$0xff]
      %v238 = vld [vmem:[%s1 + $0x50] sm:$0xff]
      %v239 = vld [vmem:[%s1 + $0x58] sm:$0xff]
      %v240 = vld [vmem:[%s1 + $0x60] sm:$0xff]
      %v241 = vld [vmem:[%s1 + $0x68] sm:$0xff]
      %v242 = vld [vmem:[%s1 + $0x70] sm:$0xff]
      %v243 = vld [vmem:[%s1 + $0x78] sm:$0xff]
      %v244 = vld [vmem:[%s1 + $0x80] sm:$0xff]
      %v245 = vld [vmem:[%s1 + $0x88] sm:$0xff]
      %v246 = vld [vmem:[%s1 + $0x90] sm:$0xff]
      %v247 = vld [vmem:[%s1 + $0x98] sm:$0xff]
      %v248 = vld [vmem:[%s1 + $0xa0] sm:$0xff]
      %v249 = vld [vmem:[%s1 + $0xa8] sm:$0xff]
      %v250 = vld [vmem:[%s1 + $0xb0] sm:$0xff]
      %v251 = vld [vmem:[%s1 + $0xb8] sm:$0xff]
      %v252 = vld [vmem:[%s1 + $0xc0] sm:$0xff]
      %v253 = vld [vmem:[%s1 + $0xc8] sm:$0xff]
      %v254 = vld [vmem:[%s1 + $0xd0] sm:$0xff]
      %v255 = vld [vmem:[%s1 + $0xd8] sm:$0xff]
      %v256 = vld [vmem:[%s1 + $0xe0] sm:$0xff]
      %v257 = vld [vmem:[%s1 + $0xe8] sm:$0xff]
      %v258 = vld [vmem:[%s1 + $0xf0] sm:$0xff]
      %v259 = vld [vmem:[%s1 + $0xf8] sm:$0xff]
      %v260 = vld [vmem:[%s1 + $0x100] sm:$0xff]
      %v261 = vld [vmem:[%s1 + $0x108] sm:$0xff]
      %v262 = vld [vmem:[%s1 + $0x110] sm:$0xff]
      %v263 = vld [vmem:[%s1 + $0x118] sm:$0xff]
      %v264 = vld [vmem:[%s1 + $0x120] sm:$0xff]
      %v265 = vld [vmem:[%s1 + $0x128] sm:$0xff]
      %v266 = vld [vmem:[%s1 + $0x130] sm:$0xff]
      %v267 = vld [vmem:[%s1 + $0x138] sm:$0xff]
      %v268 = vld [vmem:[%s1 + $0x140] sm:$0xff]
      %v269 = vld [vmem:[%s1 + $0x148] sm:$0xff]
      %v270 = vld [vmem:[%s1 + $0x150] sm:$0xff]
      %v271 = vld [vmem:[%s1 + $0x158] sm:$0xff]
      %v272 = vld [vmem:[%s1 + $0x160] sm:$0xff]
      %v273 = vld [vmem:[%s1 + $0x168] sm:$0xff]
      %v274 = vld [vmem:[%s1 + $0x170] sm:$0xff]
      %v275 = vld [vmem:[%s1 + $0x178] sm:$0xff]
      %v276 = vld [vmem:[%s1 + $0x180] sm:$0xff]
      %v277 = vld [vmem:[%s1 + $0x188] sm:$0xff]
      %v278 = vld [vmem:[%s1 + $0x190] sm:$0xff]
      %v279 = vld [vmem:[%s1 + $0x198] sm:$0xff]
      %v280 = vld [vmem:[%s1 + $0x1a0] sm:$0xff]
      %v281 = vld [vmem:[%s1 + $0x1a8] sm:$0xff]
      %v282 = vld [vmem:[%s1 + $0x1b0] sm:$0xff]
      %v283 = vld [vmem:[%s1 + $0x1b8] sm:$0xff]
      %v284 = vld [vmem:[%s1 + $0x1c0] sm:$0xff]
      %v285 = vld [vmem:[%s1 + $0x1c8] sm:$0xff]
      %v286 = vld [vmem:[%s1 + $0x1d0] sm:$0xff]
      %v287 = vld [vmem:[%s1 + $0x1d8] sm:$0xff]
      %v288 = vld [vmem:[%s1 + $0x1e0] sm:$0xff]
      %v289 = vld [vmem:[%s1 + $0x1e8] sm:$0xff]
      %v290 = vld [vmem:[%s1 + $0x1f0] sm:$0xff]
      %v291 = vld [vmem:[%s1 + $0x1f8] sm:$0xff]
      %v292 = vld [vmem:[%s1 + $0x200] sm:$0xff]
      %v293 = vld [vmem:[%s1 + $0x208] sm:$0xff]
      %v294 = vld [vmem:[%s1 + $0x210] sm:$0xff]
      %v295 = vld [vmem:[%s1 + $0x218] sm:$0xff]
      %v296 = vld [vmem:[%s1 + $0x220] sm:$0xff]
      %v297 = vld [vmem:[%s1 + $0x228] sm:$0xff]
      %v298 = vld [vmem:[%s1 + $0x230] sm:$0xff]
      %v299 = vld [vmem:[%s1 + $0x238] sm:$0xff]
      %v300 = vld [vmem:[%s1 + $0x240] sm:$0xff]
      %v301 = vld [vmem:[%s1 + $0x248] sm:$0xff]
      %v302 = vld [vmem:[%s1 + $0x250] sm:$0xff]
      %v303 = vld [vmem:[%s1 + $0x258] sm:$0xff]
      %v304 = vld [vmem:[%s1 + $0x260] sm:$0xff]
      %v305 = vld [vmem:[%s1 + $0x268] sm:$0xff]
      %v306 = vld [vmem:[%s1 + $0x270] sm:$0xff]
      %v307 = vld [vmem:[%s1 + $0x278] sm:$0xff]
      %v308 = vld [vmem:[%s1 + $0x280] sm:$0xff]
      %v309 = vld [vmem:[%s1 + $0x288] sm:$0xff]
      %v310 = vld [vmem:[%s1 + $0x290] sm:$0xff]
      %v311 = vld [vmem:[%s1 + $0x298] sm:$0xff]
      %v312 = vld [vmem:[%s1 + $0x2a0] sm:$0xff]
      %v313 = vld [vmem:[%s1 + $0x2a8] sm:$0xff]
      %v314 = vld [vmem:[%s1 + $0x2b0] sm:$0xff]
      %v315 = vld [vmem:[%s1 + $0x2b8] sm:$0xff]
      %v316 = vld [vmem:[%s1 + $0x2c0] sm:$0xff]
      %v317 = vld [vmem:[%s1 + $0x2c8] sm:$0xff]
      %v318 = vld [vmem:[%s1 + $0x2d0] sm:$0xff]
      %v319 = vld [vmem:[%s1 + $0x2d8] sm:$0xff]
      %v320 = vld [vmem:[%s1 + $0x2e0] sm:$0xff]
      %v321 = vld [vmem:[%s1 + $0x2e8] sm:$0xff]
      %v322 = vld [vmem:[%s1 + $0x2f0] sm:$0xff]
      %v323 = vld [vmem:[%s1 + $0x2f8] sm:$0xff]
      %v324 = vld [vmem:[%s2] sm:$0x1]
      %v326 = vperm.slane %v324, 0
      %328 = vmatpush.msra.mxu0 %v243
      %329 = vmatpush.msra.mxu0 %v242
      %330 = vmatpush.msra.mxu0 %v241
      %331 = vmatpush.msra.mxu0 %v240
      %332 = vmatpush.msra.mxu0 %v239
      %333 = vmatpush.msra.mxu0 %v238
      %334 = vmatpush.msra.mxu0 %v237
      %335 = vmatpush.msra.mxu0 %v236
      %336 = vmatpush.msra.mxu0 %v235
      %337 = vmatpush.msra.mxu0 %v234
      %338 = vmatpush.msra.mxu0 %v233
      %339 = vmatpush.msra.mxu0 %v232
      %340 = vmatpush.msra.mxu0 %v231
      %341 = vmatpush.msra.mxu0 %v230
      %342 = vmatpush.msra.mxu0 %v229
      %343 = vmatpush.msra.mxu0 %v228
      %344 = vmatmul.f32.gmra.mxu0 %v198
      %v345 = vpop.f32.mrf.mxu0
      %v346 = vadd.f32 %v326, %v345
      %347 = vmatmul.f32.gmra.mxu0 %v204
      %v348 = vpop.f32.mrf.mxu0
      %v349 = vadd.f32 %v326, %v348
      %350 = vmatmul.f32.gmra.mxu0 %v210
      %v351 = vpop.f32.mrf.mxu0
      %v352 = vadd.f32 %v326, %v351
      %353 = vmatmul.f32.gmra.mxu0 %v216
      %v354 = vpop.f32.mrf.mxu0
      %v355 = vadd.f32 %v326, %v354
      %356 = vmatmul.f32.gmra.mxu0 %v222
      %v357 = vpop.f32.mrf.mxu0
      %v358 = vadd.f32 %v326, %v357
      %359 = vdwg.mxu0
      %360 = vmatpush.msra.mxu0 %v259
      %361 = vmatpush.msra.mxu0 %v258
      %362 = vmatpush.msra.mxu0 %v257
      %363 = vmatpush.msra.mxu0 %v256
      %364 = vmatpush.msra.mxu0 %v255
      %365 = vmatpush.msra.mxu0 %v254
      %366 = vmatpush.msra.mxu0 %v253
      %367 = vmatpush.msra.mxu0 %v252
      %368 = vmatpush.msra.mxu0 %v251
      %369 = vmatpush.msra.mxu0 %v250
      %370 = vmatpush.msra.mxu0 %v249
      %371 = vmatpush.msra.mxu0 %v248
      %372 = vmatpush.msra.mxu0 %v247
      %373 = vmatpush.msra.mxu0 %v246
      %374 = vmatpush.msra.mxu0 %v245
      %375 = vmatpush.msra.mxu0 %v244
      %376 = vmatmul.f32.gmra.mxu0 %v199
      %v377 = vpop.f32.mrf.mxu0
      %v378 = vadd.f32 %v346, %v377
      %379 = vmatmul.f32.gmra.mxu0 %v205
      %v380 = vpop.f32.mrf.mxu0
      %v381 = vadd.f32 %v349, %v380
      %382 = vmatmul.f32.gmra.mxu0 %v211
      %v383 = vpop.f32.mrf.mxu0
      %v384 = vadd.f32 %v352, %v383
      %385 = vmatmul.f32.gmra.mxu0 %v217
      %v386 = vpop.f32.mrf.mxu0
      %v387 = vadd.f32 %v355, %v386
      %388 = vmatmul.f32.gmra.mxu0 %v223
      %v389 = vpop.f32.mrf.mxu0
      %v390 = vadd.f32 %v358, %v389
      %391 = vdwg.mxu0
      %392 = vmatpush.msra.mxu0 %v275
      %393 = vmatpush.msra.mxu0 %v274
      %394 = vmatpush.msra.mxu0 %v273
      %395 = vmatpush.msra.mxu0 %v272
      %396 = vmatpush.msra.mxu0 %v271
      %397 = vmatpush.msra.mxu0 %v270
      %398 = vmatpush.msra.mxu0 %v269
      %399 = vmatpush.msra.mxu0 %v268
      %400 = vmatpush.msra.mxu0 %v267
      %401 = vmatpush.msra.mxu0 %v266
      %402 = vmatpush.msra.mxu0 %v265
      %403 = vmatpush.msra.mxu0 %v264
      %404 = vmatpush.msra.mxu0 %v263
      %405 = vmatpush.msra.mxu0 %v262
      %406 = vmatpush.msra.mxu0 %v261
      %407 = vmatpush.msra.mxu0 %v260
      %408 = vmatmul.f32.gmra.mxu0 %v200
      %v409 = vpop.f32.mrf.mxu0
      %v410 = vadd.f32 %v378, %v409
      %411 = vmatmul.f32.gmra.mxu0 %v206
      %v412 = vpop.f32.mrf.mxu0
      %v413 = vadd.f32 %v381, %v412
      %414 = vmatmul.f32.gmra.mxu0 %v212
      %v415 = vpop.f32.mrf.mxu0
      %v416 = vadd.f32 %v384, %v415
      %417 = vmatmul.f32.gmra.mxu0 %v218
      %v418 = vpop.f32.mrf.mxu0
      %v419 = vadd.f32 %v387, %v418
      %420 = vmatmul.f32.gmra.mxu0 %v224
      %v421 = vpop.f32.mrf.mxu0
      %v422 = vadd.f32 %v390, %v421
      %423 = vdwg.mxu0
      %424 = vmatpush.msra.mxu0 %v291
      %425 = vmatpush.msra.mxu0 %v290
      %426 = vmatpush.msra.mxu0 %v289
      %427 = vmatpush.msra.mxu0 %v288
      %428 = vmatpush.msra.mxu0 %v287
      %429 = vmatpush.msra.mxu0 %v286
      %430 = vmatpush.msra.mxu0 %v285
      %431 = vmatpush.msra.mxu0 %v284
      %432 = vmatpush.msra.mxu0 %v283
      %433 = vmatpush.msra.mxu0 %v282
      %434 = vmatpush.msra.mxu0 %v281
      %435 = vmatpush.msra.mxu0 %v280
      %436 = vmatpush.msra.mxu0 %v279
      %437 = vmatpush.msra.mxu0 %v278
      %438 = vmatpush.msra.mxu0 %v277
      %439 = vmatpush.msra.mxu0 %v276
      %440 = vmatmul.f32.gmra.mxu0 %v201
      %v441 = vpop.f32.mrf.mxu0
      %v442 = vadd.f32 %v410, %v441
      %443 = vmatmul.f32.gmra.mxu0 %v207
      %v444 = vpop.f32.mrf.mxu0
      %v445 = vadd.f32 %v413, %v444
      %446 = vmatmul.f32.gmra.mxu0 %v213
      %v447 = vpop.f32.mrf.mxu0
      %v448 = vadd.f32 %v416, %v447
      %449 = vmatmul.f32.gmra.mxu0 %v219
      %v450 = vpop.f32.mrf.mxu0
      %v451 = vadd.f32 %v419, %v450
      %452 = vmatmul.f32.gmra.mxu0 %v225
      %v453 = vpop.f32.mrf.mxu0
      %v454 = vadd.f32 %v422, %v453
      %455 = vdwg.mxu0
      %456 = vmatpush.msra.mxu0 %v307
      %457 = vmatpush.msra.mxu0 %v306
      %458 = vmatpush.msra.mxu0 %v305
      %459 = vmatpush.msra.mxu0 %v304
      %460 = vmatpush.msra.mxu0 %v303
      %461 = vmatpush.msra.mxu0 %v302
      %462 = vmatpush.msra.mxu0 %v301
      %463 = vmatpush.msra.mxu0 %v300
      %464 = vmatpush.msra.mxu0 %v299
      %465 = vmatpush.msra.mxu0 %v298
      %466 = vmatpush.msra.mxu0 %v297
      %467 = vmatpush.msra.mxu0 %v296
      %468 = vmatpush.msra.mxu0 %v295
      %469 = vmatpush.msra.mxu0 %v294
      %470 = vmatpush.msra.mxu0 %v293
      %471 = vmatpush.msra.mxu0 %v292
      %472 = vmatmul.f32.gmra.mxu0 %v202
      %v473 = vpop.f32.mrf.mxu0
      %v474 = vadd.f32 %v442, %v473
      %475 = vmatmul.f32.gmra.mxu0 %v208
      %v476 = vpop.f32.mrf.mxu0
      %v477 = vadd.f32 %v445, %v476
      %478 = vmatmul.f32.gmra.mxu0 %v214
      %v479 = vpop.f32.mrf.mxu0
      %v480 = vadd.f32 %v448, %v479
      %481 = vmatmul.f32.gmra.mxu0 %v220
      %v482 = vpop.f32.mrf.mxu0
      %v483 = vadd.f32 %v451, %v482
      %484 = vmatmul.f32.gmra.mxu0 %v226
      %v485 = vpop.f32.mrf.mxu0
      %v486 = vadd.f32 %v454, %v485
      %487 = vdwg.mxu0
      %488 = vmatpush.msra.mxu0 %v323
      %489 = vmatpush.msra.mxu0 %v322
      %490 = vmatpush.msra.mxu0 %v321
      %491 = vmatpush.msra.mxu0 %v320
      %492 = vmatpush.msra.mxu0 %v319
      %493 = vmatpush.msra.mxu0 %v318
      %494 = vmatpush.msra.mxu0 %v317
      %495 = vmatpush.msra.mxu0 %v316
      %496 = vmatpush.msra.mxu0 %v315
      %497 = vmatpush.msra.mxu0 %v314
      %498 = vmatpush.msra.mxu0 %v313
      %499 = vmatpush.msra.mxu0 %v312
      %500 = vmatpush.msra.mxu0 %v311
      %501 = vmatpush.msra.mxu0 %v310
      %502 = vmatpush.msra.mxu0 %v309
      %503 = vmatpush.msra.mxu0 %v308
      %504 = vmatmul.f32.gmra.mxu0 %v203
      %v505 = vpop.f32.mrf.mxu0
      %v506 = vadd.f32 %v474, %v505
      %507 = vmatmul.f32.gmra.mxu0 %v209
      %v508 = vpop.f32.mrf.mxu0
      %v509 = vadd.f32 %v477, %v508
      %510 = vmatmul.f32.gmra.mxu0 %v215
      %v511 = vpop.f32.mrf.mxu0
      %v512 = vadd.f32 %v480, %v511
      %513 = vmatmul.f32.gmra.mxu0 %v221
      %v514 = vpop.f32.mrf.mxu0
      %v515 = vadd.f32 %v483, %v514
      %516 = vmatmul.f32.gmra.mxu0 %v227
      %v517 = vpop.f32.mrf.mxu0
      %v518 = vadd.f32 %v486, %v517
      %519 = vdwg.mxu0
      %v520 = vld [vmem:[%s3] sm:$0xff]
      %v521 = vld [vmem:[%s3 + $0x8] sm:$0xff]
      %v522 = vld [vmem:[%s3 + $0x10] sm:$0xff]
      %v523 = vld [vmem:[%s3 + $0x18] sm:$0xff]
      %v524 = vld [vmem:[%s3 + $0x20] sm:$0x3]
      %v525 = vlaneseq
      %v526 = vshrl.u32 %v525, 7
      %v527 = vadd.s32 %v526, 8
      %v528 = vadd.s32 %v526, 16
      %v529 = vadd.s32 %v526, 24
      %v530 = vadd.s32 %v526, 32
      %vm531 = vcmp.eq.s32.totalorder %v526, 0
      %vm532 = vcmp.eq.s32.totalorder %v527, 0
      %vm533 = vcmp.eq.s32.totalorder %v528, 0
      %vm534 = vcmp.eq.s32.totalorder %v529, 0
      %vm535 = vcmp.eq.s32.totalorder %v530, 0
      %vm536 = vcmp.eq.s32.totalorder %v526, 17
      %vm537 = vcmp.eq.s32.totalorder %v527, 17
      %vm538 = vcmp.eq.s32.totalorder %v528, 17
      %vm539 = vcmp.eq.s32.totalorder %v529, 17
      %vm540 = vcmp.eq.s32.totalorder %v530, 17
      %vm541 = vmor %vm531, %vm536
      %vm542 = vmor %vm532, %vm537
      %vm543 = vmor %vm533, %vm538
      %vm544 = vmor %vm534, %vm539
      %vm545 = vmor %vm535, %vm540
      %v546 = vadd.f32 %v506, %v520
      %v547 = vadd.f32 %v509, %v521
      %v548 = vadd.f32 %v512, %v522
      %v549 = vadd.f32 %v515, %v523
      %v550 = vadd.f32 %v518, %v524
      %v551 = vsel %vm541, 1, 0
      %v552 = vsel %vm542, 1, 0
      %v553 = vsel %vm543, 1, 0
      %v554 = vsel %vm544, 1, 0
      %v555 = vsel %vm545, 1, 0
      %vm556 = vcmp.eq.s32.totalorder %v551, 1
      %vm557 = vcmp.eq.s32.totalorder %v552, 1
      %vm558 = vcmp.eq.s32.totalorder %v553, 1
      %vm559 = vcmp.eq.s32.totalorder %v554, 1
      %vm560 = vcmp.eq.s32.totalorder %v555, 1
      %v561 = vsel %vm556, %v520, %v546
      %v562 = vsel %vm557, %v521, %v547
      %v563 = vsel %vm558, %v522, %v548
      %v564 = vsel %vm559, %v523, %v549
      %v565 = vsel %vm560, %v524, %v550
      %566 = vst [vmem:[%s197] sm:$0xff] %v561
      %567 = vst [vmem:[%s197 + $0x8] sm:$0xff] %v562
      %568 = vst [vmem:[%s197 + $0x10] sm:$0xff] %v563
      %569 = vst [vmem:[%s197 + $0x18] sm:$0xff] %v564
      %570 = vst [vmem:[%s197 + $0x20] sm:$0x3] %v565
      %p571 = scmp.lt.s32.totalorder %s15, 1
      %s572 = scalar_select %p571, %s15, 1
      %s573 = smul.addr %s572, 5
      %s574 = smul.addr %s573, 8
      %s575 = scalar_lea.vmem %s4, %s574
      // Predicated region
      $region37: #{tpu_custom_call.1} parent=35 // pred_check
        %p576 = pneg %p122
      $region38: #{tpu_custom_call.1} parent=35 // pred_check_branch
        %578 = sbr.rel (%p576) target = $region40
      $region39: #{tpu_custom_call.1} parent=35 // pred_region
        _
      $region40: #{tpu_custom_call.1} parent=35 // pred_fallthru
        _
    $region36: #{tpu_custom_call.1} parent=5 // pred_fallthru
      _
    %p579 = scmp.le.s32.totalorder 2, %s10
    // Predicated region
    $region41: #{tpu_custom_call.1} parent=5 // pred_check
      %p580 = pneg %p579
    $region42: #{tpu_custom_call.1} parent=5 // pred_check_branch
      %582 = sbr.rel (%p580) target = $region44
    $region43: #{tpu_custom_call.1} parent=5 // pred_region
      %s583 = ssub.s32 %s10, 2
      // Predicated region
      $region45: #{tpu_custom_call.1} parent=43 // pred_check
        %p584 = pneg %p128
      $region46: #{tpu_custom_call.1} parent=43 // pred_check_branch
        %586 = sbr.rel (%p584) target = $region48
      $region47: #{tpu_custom_call.1} parent=43 // pred_region
        %p587 = scmp.lt.s32.totalorder %s16, 1
        %s588 = scalar_select %p587, %s16, 1
        %s589 = smul.addr %s588, 5
        %s590 = smul.addr %s589, 8
        %s591 = scalar_lea.vmem %s4, %s590
      $region48: #{tpu_custom_call.1} parent=43 // pred_fallthru
        _
    $region44: #{tpu_custom_call.1} parent=5 // pred_fallthru
      _
  $region6: #{tpu_custom_call.1} parent=0 // loop_footer
    %s14 = sadd.s32 1, %s10
  $region7: #{tpu_custom_call.1} parent=0 // loop_footer_branch
    %9 = sbr.rel target = $region3
  $region8: #{tpu_custom_call.1} parent=0 // loop_exit
    _

</llo_original>
